<compile_context>
chip_gen: v7x
topology: tpu7x:2x2x1
jax: 0.10.0
libtpu: 0.0.40
codegen_flags: <defaults>
</compile_context>

<pallas_src>
import functools
import math

import jax
import jax.numpy as jnp
from jax import lax
from jax.experimental import pallas as pl
from jax.experimental.pallas import tpu as pltpu


def make_positional_encoding(d_model: int, max_len: int) -> jnp.ndarray:
    """Reference sinusoidal PE table, shape (1, max_len, d_model)."""
    position = jnp.arange(max_len, dtype=jnp.float32)[:, None]            # (L, 1)
    div_term = jnp.exp(
        jnp.arange(0, d_model, 2, dtype=jnp.float32)
        * (-math.log(10000.0) / d_model)
    )                                                                     # (D/2,)
    sin_part = jnp.sin(position * div_term)                               # (L, D/2)
    cos_part = jnp.cos(position * div_term)                               # (L, D/2)
    pe = jnp.stack([sin_part, cos_part], axis=-1).reshape(max_len, d_model)
    return pe[None, :, :]                                                 # (1, L, D)


def _pe_dropout_kernel(seed_ref, x_ref, pos_ref, rate_ref, o_ref, *,
                       p: float, training: bool, rows_per_tile: int,
                       keep_threshold: int, inv_keep: float):
    # x_ref/o_ref: (TS, D) row tile of the flattened (B*S, D) input/output.
    # pos_ref: (TS, 1) f32 positions (row index mod S); rate_ref: (1, D) f32
    # per-column angular rates (div_term interleaved for even/odd columns).
    ts, d = x_ref.shape
    x = x_ref[...].astype(jnp.float32)                 # (TS, D)
    pos = pos_ref[...]                                  # (TS, 1)
    rate = rate_ref[...]                                # (1, D)

    col = lax.broadcasted_iota(jnp.int32, (ts, d), 1)   # column index
    angle = pos * rate                                  # (TS, D)
    pe = jnp.where((col & 1) == 0, jnp.sin(angle), jnp.cos(angle))
    y = x + pe

    if training and p > 0.0:
        # Stateless hash-based dropout: murmur3 finalizer over the flat global
        # element index mixed with the runtime seed (SMEM scalar prefetch).
        row = lax.broadcasted_iota(jnp.int32, (ts, d), 0)
        row = row + pl.program_id(0) * rows_per_tile
        flat = (row * d + col).astype(jnp.uint32)
        seed_u = seed_ref[0].astype(jnp.uint32)
        h = flat ^ (seed_u * jnp.uint32(0x9E3779B1))
        h = h ^ (h >> 16)
        h = h * jnp.uint32(0x85EBCA6B)
        h = h ^ (h >> 13)
        h = h * jnp.uint32(0xC2B2AE35)
        h = h ^ (h >> 16)
        keep = h >= jnp.uint32(keep_threshold)          # P(keep) = 1 - p
        y = jnp.where(keep, y * jnp.float32(inv_keep), jnp.float32(0.0))

    o_ref[...] = y.astype(o_ref.dtype)


def _pick_row_tile(rows: int, d: int, itemsize: int,
                   target_block_bytes: int = 4 * 1024 * 1024) -> int:
    """Largest row tile (multiple of 8, <= target bytes) or the full extent."""
    max_rows = (target_block_bytes // max(1, d * itemsize)) // 8 * 8
    max_rows = max(8, max_rows)
    if rows <= max_rows:
        return rows          # full extent is always a legal block dim
    return max_rows


def positional_encoding_forward(
    x: jnp.ndarray,
    *,
    p: float = 0.1,
    training: bool = False,
    seed: int = 0,
) -> jnp.ndarray:
    """Equivalent of PositionalEncoding.forward(x): x + pe[:, :S, :], then dropout.

    x : (B, S, D) float32 / bfloat16
    """
    B, S, D = x.shape
    R = B * S
    itemsize = jnp.dtype(x.dtype).itemsize

    # Flattened (B*S, D) view; tiny per-row position column and per-column rate row.
    x2 = x.reshape(R, D)
    pos = (jnp.arange(R, dtype=jnp.int32) % S).astype(jnp.float32)[:, None]   # (R, 1)
    div_term = jnp.exp(
        jnp.arange(0, D, 2, dtype=jnp.float32) * (-math.log(10000.0) / D)
    )
    rate = jnp.repeat(div_term, 2)[:D][None, :]                               # (1, D)
    seed_arr = jnp.array([seed], dtype=jnp.int32)

    ts = _pick_row_tile(R, D, itemsize)
    num_tiles = pl.cdiv(R, ts)

    # VMEM budget: double-buffered x-in + out tiles plus the tiny side inputs.
    block_bytes = ts * D * itemsize
    side_bytes = 2 * (ts * 4 + D * 4)
    vmem_needed = 4 * block_bytes + side_bytes + (2 << 20)
    vmem_limit = int(min(48 * 1024 * 1024, max(vmem_needed, 16 * 1024 * 1024)))

    keep_threshold = min(int(round(float(p) * 4294967296.0)), 2**32 - 1)
    inv_keep = 1.0 / (1.0 - float(p)) if p < 1.0 else 0.0

    kernel = functools.partial(
        _pe_dropout_kernel,
        p=float(p),
        training=bool(training),
        rows_per_tile=int(ts),
        keep_threshold=keep_threshold,
        inv_keep=inv_keep,
    )

    y2 = pl.pallas_call(
        kernel,
        out_shape=jax.ShapeDtypeStruct((R, D), x.dtype),
        grid_spec=pltpu.PrefetchScalarGridSpec(
            num_scalar_prefetch=1,                       # seed lives in SMEM
            grid=(num_tiles,),
            in_specs=[
                pl.BlockSpec((ts, D), lambda i, seed: (i, 0)),   # x rows
                pl.BlockSpec((ts, 1), lambda i, seed: (i, 0)),   # positions
                pl.BlockSpec((1, D), lambda i, seed: (0, 0)),    # rates (resident)
            ],
            out_specs=pl.BlockSpec((ts, D), lambda i, seed: (i, 0)),
        ),
        compiler_params=pltpu.CompilerParams(
            dimension_semantics=("parallel",),
            vmem_limit_bytes=vmem_limit,
        ),
    )(seed_arr, x2, pos, rate)

    return y2.reshape(B, S, D)


if __name__ == "__main__":
    # Small shapes consistent with the module: batch=2, seq=8, d_model=128.
    B, S, D = 2, 8, 128
    MAX_LEN = 64
    P_DROP = 0.1

    key = jax.random.PRNGKey(0)
    x = jax.random.normal(key, (B, S, D), dtype=jnp.float32)
    pe_ref = make_positional_encoding(D, MAX_LEN)
    ref = x + pe_ref[:, :S, :]

    # Eval mode: dropout is identity -> must match x + pe[:, :S, :].
    y_eval = jax.block_until_ready(
        positional_encoding_forward(x, p=P_DROP, training=False)
    )
    assert y_eval.shape == (B, S, D)
    assert jnp.allclose(y_eval, ref, atol=1e-4), "eval-mode mismatch"

    # Training mode: surviving elements are (x + pe) / (1 - p); dropped are 0.
    y_train = jax.block_until_ready(
        positional_encoding_forward(x, p=P_DROP, training=True, seed=123)
    )
    keep_mask = jnp.abs(y_train) > 1e-30
    assert jnp.allclose(
        jnp.where(keep_mask, y_train, 0.0),
        jnp.where(keep_mask, ref / (1.0 - P_DROP), 0.0),
        atol=1e-3,
    ), "training-mode scaling mismatch"
    frac_kept = float(jnp.mean(keep_mask.astype(jnp.float32)))
    assert 0.75 < frac_kept < 0.99, f"unexpected keep fraction {frac_kept}"

    print("KERNEL_OK")
</pallas_src>

<mosaic_0001>
module attributes {stable_mosaic.version = 11 : i64} {
  func.func @_pe_dropout_kernel(%arg0: i32, %arg1: memref<1xi32, #tpu.memory_space<smem>>, %arg2: memref<16x128xf32, #tpu.memory_space<vmem>>, %arg3: memref<16x1xf32, #tpu.memory_space<vmem>>, %arg4: memref<1x128xf32, #tpu.memory_space<vmem>>, %arg5: memref<16x128xf32, #tpu.memory_space<vmem>>) attributes {dimension_semantics = [#tpu.dimension_semantics<parallel>], iteration_bounds = array<i64: 1>, scalar_prefetch = 1 : i64, scratch_operands = 0 : i64, tpu.core_type = #tpu.core_type<tc>, window_params = [{transform_indices = @transform_0, window_bounds = array<i64: 16, 128>}, {transform_indices = @transform_1, window_bounds = array<i64: 16, 1>}, {pipeline_mode = #tpu.pipeline_mode<synchronous>, transform_indices = @transform_2, window_bounds = array<i64: 1, 128>}, {transform_indices = @transform_3, window_bounds = array<i64: 16, 128>}]} {
    %c0 = arith.constant 0 : index
    %c0_0 = arith.constant 0 : index
    %0 = vector.load %arg2[%c0, %c0_0] : memref<16x128xf32, #tpu.memory_space<vmem>>, vector<16x128xf32>
    %c0_1 = arith.constant 0 : index
    %c0_2 = arith.constant 0 : index
    %1 = vector.load %arg3[%c0_1, %c0_2] : memref<16x1xf32, #tpu.memory_space<vmem>>, vector<16x1xf32>
    %c0_3 = arith.constant 0 : index
    %c0_4 = arith.constant 0 : index
    %2 = vector.load %arg4[%c0_3, %c0_4] : memref<1x128xf32, #tpu.memory_space<vmem>>, vector<1x128xf32>
    %3 = tpu.iota {dimensions = array<i32: 1>} : vector<16x128xi32>
    %4 = vector.broadcast %1 : vector<16x1xf32> to vector<16x128xf32>
    %5 = vector.broadcast %2 : vector<1x128xf32> to vector<16x128xf32>
    %6 = arith.mulf %4, %5 : vector<16x128xf32>
    %c1_i32 = arith.constant 1 : i32
    %7 = vector.broadcast %c1_i32 : i32 to vector<16x128xi32>
    %8 = arith.andi %3, %7 : vector<16x128xi32>
    %c0_i32 = arith.constant 0 : i32
    %9 = vector.broadcast %c0_i32 : i32 to vector<16x128xi32>
    %10 = arith.cmpi eq, %8, %9 : vector<16x128xi32>
    %11 = math.sin %6 : vector<16x128xf32>
    %12 = math.cos %6 : vector<16x128xf32>
    %13 = arith.select %10, %11, %12 : vector<16x128xi1>, vector<16x128xf32>
    %14 = arith.addf %0, %13 : vector<16x128xf32>
    %c0_5 = arith.constant 0 : index
    %c0_6 = arith.constant 0 : index
    %15 = vector.load %arg5[%c0_5, %c0_6] : memref<16x128xf32, #tpu.memory_space<vmem>>, vector<16x128xf32>
    tpu.vector_store %arg5[%c0_5, %c0_6], %14 {strides = array<i32>} : memref<16x128xf32, #tpu.memory_space<vmem>>, vector<16x128xf32>,
    return
  }
  func.func @transform_0(%arg0: i32, %arg1: memref<1xi32, #tpu.memory_space<smem>>) -> (i32, i32) {
    %c0_i32 = arith.constant 0 : i32
    %c0_i32_0 = arith.constant 0 : i32
    return %arg0, %c0_i32 : i32, i32
  }
  func.func @transform_1(%arg0: i32, %arg1: memref<1xi32, #tpu.memory_space<smem>>) -> (i32, i32) {
    %c0_i32 = arith.constant 0 : i32
    %c0_i32_0 = arith.constant 0 : i32
    return %arg0, %c0_i32 : i32, i32
  }
  func.func @transform_2(%arg0: i32, %arg1: memref<1xi32, #tpu.memory_space<smem>>) -> (i32, i32) {
    %c0_i32 = arith.constant 0 : i32
    %c0_i32_0 = arith.constant 0 : i32
    %c0_i32_1 = arith.constant 0 : i32
    return %c0_i32, %c0_i32_0 : i32, i32
  }
  func.func @transform_3(%arg0: i32, %arg1: memref<1xi32, #tpu.memory_space<smem>>) -> (i32, i32) {
    %c0_i32 = arith.constant 0 : i32
    %c0_i32_0 = arith.constant 0 : i32
    return %arg0, %c0_i32 : i32, i32
  }
}

</mosaic_0001>

<llo_original>
// kernel: tpu_custom_call.1
$region0: #{tpu_custom_call.1}
  #allocation0 [shape = 'u32[]', space=smem, size = 0x4, offset = 0x4, fixed_abs, tag = 'smem constant byte address 0x4 - core index']
  #allocation1 [shape = 'u32[144,128]{1,0:T(1,128)}', space=vmem, size = 0x12000, scoped, tag = 'internal scratch']
  #allocation2 [shape = 's32[1]{0}', space=sflag, size = 0x4, scoped, tag = 'scoped memory for tpu_custom_call.1']
  #allocation3 [shape = 's32[1]{0:T(128)S(6)}', space=smem, size = 0x200, scoped, tag = 'prefetched SMEM operand 0']
  %s0 = inlined_call_operand.<no memory space> [shape: s32[1], index: 0, kind: input, shape index: {}]
  %s1 = inlined_call_operand.vmem [shape: f32[16,128], index: 1, kind: input, shape index: {}]
  %s2 = inlined_call_operand.vmem [shape: f32[16,1], index: 2, kind: input, shape index: {}]
  %s3 = inlined_call_operand.vmem [shape: f32[1,128], index: 3, kind: input, shape index: {}]
  %s4 = inlined_call_operand.hbm [shape: f32[16,128], index: 4, kind: output, shape index: {}]
  %s5 = sld [smem:[#allocation0]]
  $region22: #{tpu_custom_call.1} parent=0
    _
  %s7 = ssub.s32 1, %s5
  %s8 = scalar_select 0, %s7, %s5
  %9 = sst [smem:[#allocation3]] %s0
  $region1: #{tpu_custom_call.1} parent=0
    #allocation4 [shape = 'u8[8192]{0}', space=vmem, size = 0x2000, scoped, tag = 'output window, operand 0, single buffered']
    #allocation5 [shape = 's32[1]{0}', space=sflag, size = 0x4, scoped, tag = 'scoped memory for tpu_custom_call.1']
    %10 = vsyncpa [#allocation5], 0
    // Predicated region
    $region2: #{tpu_custom_call.1} parent=1 // pred_check
      _
    $region3: #{tpu_custom_call.1} parent=1 // pred_check_branch
      %12 = sbr.rel (0) target = $region5
    $region4: #{tpu_custom_call.1} parent=1 // pred_region
      _
    $region5: #{tpu_custom_call.1} parent=1 // pred_fallthru
      _
    // Predicated region
    $region6: #{tpu_custom_call.1} parent=1 // pred_check
      _
    $region7: #{tpu_custom_call.1} parent=1 // pred_check_branch
      %14 = sbr.rel (0) target = $region9
    $region8: #{tpu_custom_call.1} parent=1 // pred_region
      _
    $region9: #{tpu_custom_call.1} parent=1 // pred_fallthru
      _
    // Predicated region
    $region10: #{tpu_custom_call.1} parent=1 // pred_check
      _
    $region11: #{tpu_custom_call.1} parent=1 // pred_check_branch
      %16 = sbr.rel (0) target = $region13
    $region12: #{tpu_custom_call.1} parent=1 // pred_region
      _
    $region13: #{tpu_custom_call.1} parent=1 // pred_fallthru
      _
    %v17 = vld [vmem:[%s1] sm:$0xff]
    %v18 = vld [vmem:[%s1 + $0x8] sm:$0xff]
    %v19 = vld [vmem:[%s2] sm:$0xff]
    %v20 = vld [vmem:[%s2 + $0x8] sm:$0xff]
    %v21 = vld [vmem:[%s3] sm:$0x1]
    %v22 = vlaneseq
    %v23 = vand.u32 %v22, 127
    %25 = vset.pattern.permute.xlu0 0
    %26 = vperm.xlu0 %25, %v19
    %v27 = vpop.permute.xlu0 %26
    %30 = vset.pattern.permute.xlu0 0
    %31 = vperm.xlu0 %30, %v20
    %v32 = vpop.permute.xlu0 %31
    %v35 = vlaneseq
    %v36 = vshrl.u32 %v35, 7
    %v37 = vsub.s32 0, %v36
    %v38 = vrot.slane %v21, %v37
    %v40 = vmul.f32 %v27, %v38
    %v41 = vmul.f32 %v32, %v38
    %v42 = vand.u32 %v23, 1
    %vm43 = vcmp.eq.s32.totalorder %v42, 0
    %v44 = vand.u32 2147483647, %v40
    %vm45 = vcmp.le.f32.partialorder %v44, 0.7853982
    %vm46 = vcmp.lt.s32.totalorder %v40, 0
    %v47 = vand.u32 %v40, 2139095040
    %v48 = vshrl.u32 %v47, 23
    %v49 = vsub.s32 %v48, 127
    %v50 = vand.u32 2147483647, %v40
    %v51 = vand.u32 %v50, 8388607
    %v52 = vor.u32 %v51, 8388608
    %v53 = vsub.s32 0, %v52
    %v54 = vadd.s32 %v49, 1
    %vm55 = vcmp.gt.s32.totalorder %v54, 0
    %v56 = vsel %vm55, %v54, 0
    %v57 = vshrl.u32 %v56, 5
    %v58 = vand.u32 %v56, 31
    %v59 = vsub.s32 32, %v58
    %v60 = vshrl.u32 683565275, %v59
    %v61 = vshll.u32 683565275, %v58
    %v62 = vshrl.u32 2475754826, %v59
    %v63 = vor.u32 %v61, %v62
    %v64 = vshll.u32 2475754826, %v58
    %v65 = vshrl.u32 2131351028, %v59
    %v66 = vor.u32 %v64, %v65
    %v67 = vshll.u32 2131351028, %v58
    %v68 = vshrl.u32 2102212464, %v59
    %v69 = vor.u32 %v67, %v68
    %v70 = vshll.u32 2102212464, %v58
    %v71 = vshrl.u32 920167782, %v59
    %v72 = vor.u32 %v70, %v71
    %v73 = vshll.u32 920167782, %v58
    %v74 = vshrl.u32 1326507024, %v59
    %v75 = vor.u32 %v73, %v74
    %vm76 = vcmp.lt.s32.totalorder %v57, 1
    %vm77 = vcmp.lt.s32.totalorder %v57, 2
    %vm78 = vcmp.lt.s32.totalorder %v57, 3
    %vm79 = vcmp.lt.s32.totalorder %v57, 4
    %v80 = vsel %vm76, %v60, %v63
    %v81 = vsel %vm79, %v69, 2102212464
    %v82 = vsel %vm78, %v66, %v81
    %v83 = vsel %vm77, %v80, %v82
    %v84 = vsel %vm76, %v63, %v66
    %v85 = vsel %vm79, %v72, 920167782
    %v86 = vsel %vm78, %v69, %v85
    %v87 = vsel %vm77, %v84, %v86
    %v88 = vsel %vm76, %v66, %v69
    %v89 = vsel %vm79, %v75, 1326507024
    %v90 = vsel %vm78, %v72, %v89
    %v91 = vsel %vm77, %v88, %v90
    %v92 = vshll.u32 %v52, 8
    %v93 = vmul.u32.u64.compose %v92, %v91
    %v94 = vextract.low.u32 %v93
    %v95 = vextract.high.u32 %v93
    %v96 = vmul.u32.u64.compose %v92, %v87
    %v97 = vextract.low.u32 %v96
    %v98 = vextract.high.u32 %v96
    %v99 = vmul.u32 %v92, %v83
    %v100 = vadd.s32 %v95, %v97
    %vm101 = vc.u32 %v95, %v97
    %v102 = vadd.s32 %v98, 1
    %v103 = vsel %vm101, %v102, %v98
    %v104 = vadd.s32 %v99, %v103
    %v105 = vadd.s32 %v104, 536870912
    %v106 = vshrl.u32 %v105, 30
    %v107 = vshll.u32 %v106, 30
    %v108 = vsub.s32 %v104, %v107
    %vm109 = vcmp.lt.s32.totalorder %v108, 0
    %v110 = vsub.s32 0, %v108
    %v111 = vsel %vm109, %v110, %v108
    %v112 = vclz %v111
    %v113 = vsub.s32 %v112, 2
    %vm114 = vcmp.gt.s32.totalorder 0, %v113
    %v115 = vsel %vm114, 0, %v113
    %v116 = vsub.s32 32, %v115
    %v117 = vshll.u32 %v108, %v115
    %v118 = vshrl.u32 %v100, %v116
    %v119 = vor.u32 %v117, %v118
    %v120 = vsub.s32 4294967266, %v115
    %v121 = vadd.s32 %v120, 127
    %v122 = vshll.u32 %v121, 23
    %v123 = vor.u32 4788187, %v122
    %v124 = vand.u32 2147483647, %v123
    %v126 = vcvt.s32.f32 %v119
    %v127 = vmul.f32 %v126, %v124
    %v128 = vxor.u32 %v127, 2147483648
    %v129 = vsel %vm46, %v128, %v127
    %v130 = vsub.s32 4, %v106
    %v131 = vsel %vm46, %v130, %v106
    %v132 = vsel %vm45, %v40, %v129
    %v133 = vsel %vm45, 0, %v131
    %v134 = vcosq.f32.pop %v132
    %v135 = vsinq.f32.pop %v132
    %vm136 = vweird.f32 %v40
    %v137 = vadd.s32 %v133, 3
    %v138 = vand.u32 %v137, 3
    %vm139 = vcmp.lt.s32.totalorder %v138, 2
    %vm140 = vcmp.eq.s32.totalorder %v138, 0
    %v141 = vxor.u32 %v135, 2147483648
    %v142 = vsel %vm140, %v134, %v141
    %vm143 = vcmp.eq.s32.totalorder %v138, 2
    %v144 = vxor.u32 %v134, 2147483648
    %v145 = vsel %vm143, %v144, %v135
    %v146 = vsel %vm139, %v142, %v145
    %v147 = vsel %vm136, nan, %v146
    %v148 = vand.u32 2147483647, %v41
    %vm149 = vcmp.le.f32.partialorder %v148, 0.7853982
    %vm150 = vcmp.lt.s32.totalorder %v41, 0
    %v151 = vand.u32 %v41, 2139095040
    %v152 = vshrl.u32 %v151, 23
    %v153 = vsub.s32 %v152, 127
    %v154 = vand.u32 2147483647, %v41
    %v155 = vand.u32 %v154, 8388607
    %v156 = vor.u32 %v155, 8388608
    %v157 = vsub.s32 0, %v156
    %v158 = vadd.s32 %v153, 1
    %vm159 = vcmp.gt.s32.totalorder %v158, 0
    %v160 = vsel %vm159, %v158, 0
    %v161 = vshrl.u32 %v160, 5
    %v162 = vand.u32 %v160, 31
    %v163 = vsub.s32 32, %v162
    %v164 = vshrl.u32 683565275, %v163
    %v165 = vshll.u32 683565275, %v162
    %v166 = vshrl.u32 2475754826, %v163
    %v167 = vor.u32 %v165, %v166
    %v168 = vshll.u32 2475754826, %v162
    %v169 = vshrl.u32 2131351028, %v163
    %v170 = vor.u32 %v168, %v169
    %v171 = vshll.u32 2131351028, %v162
    %v172 = vshrl.u32 2102212464, %v163
    %v173 = vor.u32 %v171, %v172
    %v174 = vshll.u32 2102212464, %v162
    %v175 = vshrl.u32 920167782, %v163
    %v176 = vor.u32 %v174, %v175
    %v177 = vshll.u32 920167782, %v162
    %v178 = vshrl.u32 1326507024, %v163
    %v179 = vor.u32 %v177, %v178
    %vm180 = vcmp.lt.s32.totalorder %v161, 1
    %vm181 = vcmp.lt.s32.totalorder %v161, 2
    %vm182 = vcmp.lt.s32.totalorder %v161, 3
    %vm183 = vcmp.lt.s32.totalorder %v161, 4
    %v184 = vsel %vm180, %v164, %v167
    %v185 = vsel %vm183, %v173, 2102212464
    %v186 = vsel %vm182, %v170, %v185
    %v187 = vsel %vm181, %v184, %v186
    %v188 = vsel %vm180, %v167, %v170
    %v189 = vsel %vm183, %v176, 920167782
    %v190 = vsel %vm182, %v173, %v189
    %v191 = vsel %vm181, %v188, %v190
    %v192 = vsel %vm180, %v170, %v173
    %v193 = vsel %vm183, %v179, 1326507024
    %v194 = vsel %vm182, %v176, %v193
    %v195 = vsel %vm181, %v192, %v194
    %v196 = vshll.u32 %v156, 8
    %v197 = vmul.u32.u64.compose %v196, %v195
    %v198 = vextract.low.u32 %v197
    %v199 = vextract.high.u32 %v197
    %v200 = vmul.u32.u64.compose %v196, %v191
    %v201 = vextract.low.u32 %v200
    %v202 = vextract.high.u32 %v200
    %v203 = vmul.u32 %v196, %v187
    %v204 = vadd.s32 %v199, %v201
    %vm205 = vc.u32 %v199, %v201
    %v206 = vadd.s32 %v202, 1
    %v207 = vsel %vm205, %v206, %v202
    %v208 = vadd.s32 %v203, %v207
    %v209 = vadd.s32 %v208, 536870912
    %v210 = vshrl.u32 %v209, 30
    %v211 = vshll.u32 %v210, 30
    %v212 = vsub.s32 %v208, %v211
    %vm213 = vcmp.lt.s32.totalorder %v212, 0
    %v214 = vsub.s32 0, %v212
    %v215 = vsel %vm213, %v214, %v212
    %v216 = vclz %v215
    %v217 = vsub.s32 %v216, 2
    %vm218 = vcmp.gt.s32.totalorder 0, %v217
    %v219 = vsel %vm218, 0, %v217
    %v220 = vsub.s32 32, %v219
    %v221 = vshll.u32 %v212, %v219
    %v222 = vshrl.u32 %v204, %v220
    %v223 = vor.u32 %v221, %v222
    %v224 = vsub.s32 4294967266, %v219
    %v225 = vadd.s32 %v224, 127
    %v226 = vshll.u32 %v225, 23
    %v227 = vor.u32 4788187, %v226
    %v228 = vand.u32 2147483647, %v227
    %v230 = vcvt.s32.f32 %v223
    %v231 = vmul.f32 %v230, %v228
    %v232 = vxor.u32 %v231, 2147483648
    %v233 = vsel %vm150, %v232, %v231
    %v234 = vsub.s32 4, %v210
    %v235 = vsel %vm150, %v234, %v210
    %v236 = vsel %vm149, %v41, %v233
    %v237 = vsel %vm149, 0, %v235
    %v238 = vcosq.f32.pop %v236
    %v239 = vsinq.f32.pop %v236
    %vm240 = vweird.f32 %v41
    %v241 = vadd.s32 %v237, 3
    %v242 = vand.u32 %v241, 3
    %vm243 = vcmp.lt.s32.totalorder %v242, 2
    %vm244 = vcmp.eq.s32.totalorder %v242, 0
    %v245 = vxor.u32 %v239, 2147483648
    %v246 = vsel %vm244, %v238, %v245
    %vm247 = vcmp.eq.s32.totalorder %v242, 2
    %v248 = vxor.u32 %v238, 2147483648
    %v249 = vsel %vm247, %v248, %v239
    %v250 = vsel %vm243, %v246, %v249
    %v251 = vsel %vm240, nan, %v250
    %v252 = vand.u32 2147483647, %v40
    %vm253 = vcmp.le.f32.partialorder %v252, 0.7853982
    %vm254 = vcmp.lt.s32.totalorder %v40, 0
    %v255 = vand.u32 %v40, 2139095040
    %v256 = vshrl.u32 %v255, 23
    %v257 = vsub.s32 %v256, 127
    %v258 = vand.u32 2147483647, %v40
    %v259 = vand.u32 %v258, 8388607
    %v260 = vor.u32 %v259, 8388608
    %v261 = vsub.s32 0, %v260
    %v262 = vadd.s32 %v257, 1
    %vm263 = vcmp.gt.s32.totalorder %v262, 0
    %v264 = vsel %vm263, %v262, 0
    %v265 = vshrl.u32 %v264, 5
    %v266 = vand.u32 %v264, 31
    %v267 = vsub.s32 32, %v266
    %v268 = vshrl.u32 683565275, %v267
    %v269 = vshll.u32 683565275, %v266
    %v270 = vshrl.u32 2475754826, %v267
    %v271 = vor.u32 %v269, %v270
    %v272 = vshll.u32 2475754826, %v266
    %v273 = vshrl.u32 2131351028, %v267
    %v274 = vor.u32 %v272, %v273
    %v275 = vshll.u32 2131351028, %v266
    %v276 = vshrl.u32 2102212464, %v267
    %v277 = vor.u32 %v275, %v276
    %v278 = vshll.u32 2102212464, %v266
    %v279 = vshrl.u32 920167782, %v267
    %v280 = vor.u32 %v278, %v279
    %v281 = vshll.u32 920167782, %v266
    %v282 = vshrl.u32 1326507024, %v267
    %v283 = vor.u32 %v281, %v282
    %vm284 = vcmp.lt.s32.totalorder %v265, 1
    %vm285 = vcmp.lt.s32.totalorder %v265, 2
    %vm286 = vcmp.lt.s32.totalorder %v265, 3
    %vm287 = vcmp.lt.s32.totalorder %v265, 4
    %v288 = vsel %vm284, %v268, %v271
    %v289 = vsel %vm287, %v277, 2102212464
    %v290 = vsel %vm286, %v274, %v289
    %v291 = vsel %vm285, %v288, %v290
    %v292 = vsel %vm284, %v271, %v274
    %v293 = vsel %vm287, %v280, 920167782
    %v294 = vsel %vm286, %v277, %v293
    %v295 = vsel %vm285, %v292, %v294
    %v296 = vsel %vm284, %v274, %v277
    %v297 = vsel %vm287, %v283, 1326507024
    %v298 = vsel %vm286, %v280, %v297
    %v299 = vsel %vm285, %v296, %v298
    %v300 = vshll.u32 %v260, 8
    %v301 = vmul.u32.u64.compose %v300, %v299
    %v302 = vextract.low.u32 %v301
    %v303 = vextract.high.u32 %v301
    %v304 = vmul.u32.u64.compose %v300, %v295
    %v305 = vextract.low.u32 %v304
    %v306 = vextract.high.u32 %v304
    %v307 = vmul.u32 %v300, %v291
    %v308 = vadd.s32 %v303, %v305
    %vm309 = vc.u32 %v303, %v305
    %v310 = vadd.s32 %v306, 1
    %v311 = vsel %vm309, %v310, %v306
    %v312 = vadd.s32 %v307, %v311
    %v313 = vadd.s32 %v312, 536870912
    %v314 = vshrl.u32 %v313, 30
    %v315 = vshll.u32 %v314, 30
    %v316 = vsub.s32 %v312, %v315
    %vm317 = vcmp.lt.s32.totalorder %v316, 0
    %v318 = vsub.s32 0, %v316
    %v319 = vsel %vm317, %v318, %v316
    %v320 = vclz %v319
    %v321 = vsub.s32 %v320, 2
    %vm322 = vcmp.gt.s32.totalorder 0, %v321
    %v323 = vsel %vm322, 0, %v321
    %v324 = vsub.s32 32, %v323
    %v325 = vshll.u32 %v316, %v323
    %v326 = vshrl.u32 %v308, %v324
    %v327 = vor.u32 %v325, %v326
    %v328 = vsub.s32 4294967266, %v323
    %v329 = vadd.s32 %v328, 127
    %v330 = vshll.u32 %v329, 23
    %v331 = vor.u32 4788187, %v330
    %v332 = vand.u32 2147483647, %v331
    %v334 = vcvt.s32.f32 %v327
    %v335 = vmul.f32 %v334, %v332
    %v336 = vxor.u32 %v335, 2147483648
    %v337 = vsel %vm254, %v336, %v335
    %v338 = vsub.s32 4, %v314
    %v339 = vsel %vm254, %v338, %v314
    %v340 = vsel %vm253, %v40, %v337
    %v341 = vsel %vm253, 0, %v339
    %v342 = vcosq.f32.pop %v340
    %v343 = vsinq.f32.pop %v340
    %vm344 = vweird.f32 %v40
    %v345 = vand.u32 %v341, 3
    %vm346 = vcmp.lt.s32.totalorder %v345, 2
    %vm347 = vcmp.eq.s32.totalorder %v345, 0
    %v348 = vxor.u32 %v343, 2147483648
    %v349 = vsel %vm347, %v342, %v348
    %vm350 = vcmp.eq.s32.totalorder %v345, 2
    %v351 = vxor.u32 %v342, 2147483648
    %v352 = vsel %vm350, %v351, %v343
    %v353 = vsel %vm346, %v349, %v352
    %v354 = vsel %vm344, nan, %v353
    %v355 = vand.u32 2147483647, %v41
    %vm356 = vcmp.le.f32.partialorder %v355, 0.7853982
    %vm357 = vcmp.lt.s32.totalorder %v41, 0
    %v358 = vand.u32 %v41, 2139095040
    %v359 = vshrl.u32 %v358, 23
    %v360 = vsub.s32 %v359, 127
    %v361 = vand.u32 2147483647, %v41
    %v362 = vand.u32 %v361, 8388607
    %v363 = vor.u32 %v362, 8388608
    %v364 = vsub.s32 0, %v363
    %v365 = vadd.s32 %v360, 1
    %vm366 = vcmp.gt.s32.totalorder %v365, 0
    %v367 = vsel %vm366, %v365, 0
    %v368 = vshrl.u32 %v367, 5
    %v369 = vand.u32 %v367, 31
    %v370 = vsub.s32 32, %v369
    %v371 = vshrl.u32 683565275, %v370
    %v372 = vshll.u32 683565275, %v369
    %v373 = vshrl.u32 2475754826, %v370
    %v374 = vor.u32 %v372, %v373
    %v375 = vshll.u32 2475754826, %v369
    %v376 = vshrl.u32 2131351028, %v370
    %v377 = vor.u32 %v375, %v376
    %v378 = vshll.u32 2131351028, %v369
    %v379 = vshrl.u32 2102212464, %v370
    %v380 = vor.u32 %v378, %v379
    %v381 = vshll.u32 2102212464, %v369
    %v382 = vshrl.u32 920167782, %v370
    %v383 = vor.u32 %v381, %v382
    %v384 = vshll.u32 920167782, %v369
    %v385 = vshrl.u32 1326507024, %v370
    %v386 = vor.u32 %v384, %v385
    %vm387 = vcmp.lt.s32.totalorder %v368, 1
    %vm388 = vcmp.lt.s32.totalorder %v368, 2
    %vm389 = vcmp.lt.s32.totalorder %v368, 3
    %vm390 = vcmp.lt.s32.totalorder %v368, 4
    %v391 = vsel %vm387, %v371, %v374
    %v392 = vsel %vm390, %v380, 2102212464
    %v393 = vsel %vm389, %v377, %v392
    %v394 = vsel %vm388, %v391, %v393
    %v395 = vsel %vm387, %v374, %v377
    %v396 = vsel %vm390, %v383, 920167782
    %v397 = vsel %vm389, %v380, %v396
    %v398 = vsel %vm388, %v395, %v397
    %v399 = vsel %vm387, %v377, %v380
    %v400 = vsel %vm390, %v386, 1326507024
    %v401 = vsel %vm389, %v383, %v400
    %v402 = vsel %vm388, %v399, %v401
    %v403 = vshll.u32 %v363, 8
    %v404 = vmul.u32.u64.compose %v403, %v402
    %v405 = vextract.low.u32 %v404
    %v406 = vextract.high.u32 %v404
    %v407 = vmul.u32.u64.compose %v403, %v398
    %v408 = vextract.low.u32 %v407
    %v409 = vextract.high.u32 %v407
    %v410 = vmul.u32 %v403, %v394
    %v411 = vadd.s32 %v406, %v408
    %vm412 = vc.u32 %v406, %v408
    %v413 = vadd.s32 %v409, 1
    %v414 = vsel %vm412, %v413, %v409
    %v415 = vadd.s32 %v410, %v414
    %v416 = vadd.s32 %v415, 536870912
    %v417 = vshrl.u32 %v416, 30
    %v418 = vshll.u32 %v417, 30
    %v419 = vsub.s32 %v415, %v418
    %vm420 = vcmp.lt.s32.totalorder %v419, 0
    %v421 = vsub.s32 0, %v419
    %v422 = vsel %vm420, %v421, %v419
    %v423 = vclz %v422
    %v424 = vsub.s32 %v423, 2
    %vm425 = vcmp.gt.s32.totalorder 0, %v424
    %v426 = vsel %vm425, 0, %v424
    %v427 = vsub.s32 32, %v426
    %v428 = vshll.u32 %v419, %v426
    %v429 = vshrl.u32 %v411, %v427
    %v430 = vor.u32 %v428, %v429
    %v431 = vsub.s32 4294967266, %v426
    %v432 = vadd.s32 %v431, 127
    %v433 = vshll.u32 %v432, 23
    %v434 = vor.u32 4788187, %v433
    %v435 = vand.u32 2147483647, %v434
    %v437 = vcvt.s32.f32 %v430
    %v438 = vmul.f32 %v437, %v435
    %v439 = vxor.u32 %v438, 2147483648
    %v440 = vsel %vm357, %v439, %v438
    %v441 = vsub.s32 4, %v417
    %v442 = vsel %vm357, %v441, %v417
    %v443 = vsel %vm356, %v41, %v440
    %v444 = vsel %vm356, 0, %v442
    %v445 = vcosq.f32.pop %v443
    %v446 = vsinq.f32.pop %v443
    %vm447 = vweird.f32 %v41
    %v448 = vand.u32 %v444, 3
    %vm449 = vcmp.lt.s32.totalorder %v448, 2
    %vm450 = vcmp.eq.s32.totalorder %v448, 0
    %v451 = vxor.u32 %v446, 2147483648
    %v452 = vsel %vm450, %v445, %v451
    %vm453 = vcmp.eq.s32.totalorder %v448, 2
    %v454 = vxor.u32 %v445, 2147483648
    %v455 = vsel %vm453, %v454, %v446
    %v456 = vsel %vm449, %v452, %v455
    %v457 = vsel %vm447, nan, %v456
    %v458 = vsel %vm43, %v147, %v354
    %v459 = vsel %vm43, %v251, %v457
    %v460 = vadd.f32 %v17, %v458
    %v461 = vadd.f32 %v18, %v459
    %462 = vst [vmem:[#allocation4] sm:$0xff] %v460
    %463 = vst [vmem:[#allocation4 + $0x8] sm:$0xff] %v461
    // Predicated region
    $region14: #{tpu_custom_call.1} parent=1 // pred_check
      _
    $region15: #{tpu_custom_call.1} parent=1 // pred_check_branch
      %465 = sbr.rel (0) target = $region17
    $region16: #{tpu_custom_call.1} parent=1 // pred_region
      %s467 = ssub.s32 256, 256
      %468 = vsyncadd [#allocation5], %s467
      %s469 = sshll.u32 [#allocation4], 4
      %s470 = int_to_ptr.vmem [resolvable:$true] %s469
      %475 = dma.vmem_to_hbm [thread:$0]  %s470, 256, %s4, [#allocation5], 128, 128, 8
    $region17: #{tpu_custom_call.1} parent=1 // pred_fallthru
      _
    // Predicated region
    $region18: #{tpu_custom_call.1} parent=1 // pred_check
      _
    $region19: #{tpu_custom_call.1} parent=1 // pred_check_branch
      %477 = sbr.rel (0) target = $region21
    $region20: #{tpu_custom_call.1} parent=1 // pred_region
      %478 = dma.done [#allocation5], 256
    $region21: #{tpu_custom_call.1} parent=1 // pred_fallthru
      _
    %479 = vsyncpa [#allocation5], 1

</llo_original>
